<compile_context>
chip_gen: v6e
topology: v6e:2x2x1
jax: 0.10.0
libtpu: 0.0.40
codegen_flags: <defaults>
</compile_context>

<pallas_src>
import jax
import jax.numpy as jnp
from jax.experimental import pallas as pl
from jax.experimental.pallas import tpu as pltpu

# ---- synthetic hyper-parameters (Parameters.G_INPUT_DIM is not in-repo) ----
G_INPUT_DIM = 64      # latent noise dim
SEQ_LEN = 32          # generator output length
H1, H2 = 256, 128     # hidden widths from the module definition
OUT_PAD = 128         # output lanes padded for lane-dense (unmasked) stores
MAX_TB = 1024         # max rows per grid step (VMEM at this size ~2 MB)


def _round_up(a, m):
    return (a + m - 1) // m * m


def wgen_kernel(x_ref, w1_ref, b1_ref, w2_ref, b2_ref, w3_ref, b3_ref, o_ref):
    """Fused 3-layer MLP: relu(x@W1+b1) -> relu(.@W2+b2) -> .@W3+b3 (padded)."""
    x = x_ref[...]                                               # bf16 [tb, 64]

    # layer 1: Linear(64->256) + ReLU   (Dropout = identity, eval mode)
    h1 = jnp.dot(x, w1_ref[...], preferred_element_type=jnp.float32) + b1_ref[...]
    h1 = jnp.maximum(h1, 0.0).astype(jnp.bfloat16)               # cast once, no scratch

    # layer 2: Linear(256->128) + ReLU  (Dropout = identity, eval mode)
    h2 = jnp.dot(h1, w2_ref[...], preferred_element_type=jnp.float32) + b2_ref[...]
    h2 = jnp.maximum(h2, 0.0).astype(jnp.bfloat16)

    # layer 3: Linear(128->seq_len), output zero-padded to 128 lanes
    out = jnp.dot(h2, w3_ref[...], preferred_element_type=jnp.float32) + b3_ref[...]
    o_ref[...] = out.astype(o_ref.dtype)


def _pick_tb(B):
    """Rows per grid step: big tiles, even (>=2) step count for large B."""
    if B <= 8:
        return 8
    steps = max(2, pl.cdiv(B, MAX_TB))
    steps += steps % 2                      # even step count -> splits across 2 TCs
    return min(MAX_TB, _round_up(pl.cdiv(B, steps), 8))


def wgenerator_forward(x, prep_params, *, tb=None):
    """x: [B, G_INPUT_DIM] f32 -> [B, SEQ_LEN] f32 (eval-mode WGenerator)."""
    w1, b1, w2, b2, w3, b3 = prep_params
    B, D = x.shape
    assert D == G_INPUT_DIM

    if tb is None:
        tb = _pick_tb(B)
    B_pad = _round_up(B, tb)

    # bf16 input, unpadded K=64; pad only batch rows when ragged.
    # (cast + pad fuse into a single XLA pass; kernel reads 128 B/row.)
    xb = x.astype(jnp.bfloat16)
    if B_pad != B:
        xb = jnp.zeros((B_pad, D), jnp.bfloat16).at[:B, :].set(xb)

    grid = (B_pad // tb,)

    def full_spec(shape):
        # Replicated weights/biases (~130 KB total): same block every step.
        return pl.BlockSpec(shape, lambda i: (0,) * len(shape))

    def _nbytes(a):
        return int(a.size) * a.dtype.itemsize

    flops = 2 * B_pad * (D * H1 + H1 * H2 + H2 * OUT_PAD)
    bytes_accessed = (_nbytes(xb) + _nbytes(w1) + _nbytes(b1) + _nbytes(w2)
                      + _nbytes(b2) + _nbytes(w3) + _nbytes(b3)
                      + B_pad * OUT_PAD * 4)

    out = pl.pallas_call(
        wgen_kernel,
        out_shape=jax.ShapeDtypeStruct((B_pad, OUT_PAD), jnp.float32),
        grid_spec=pltpu.PrefetchScalarGridSpec(
            num_scalar_prefetch=0,
            grid=grid,
            in_specs=[
                pl.BlockSpec((tb, D), lambda i: (i, 0)),  # x   [B_pad, 64] bf16
                full_spec(w1.shape),                      # W1  [64, 256]   bf16
                full_spec(b1.shape),                      # b1  [1, 256]    f32
                full_spec(w2.shape),                      # W2  [256, 128]  bf16
                full_spec(b2.shape),                      # b2  [1, 128]    f32
                full_spec(w3.shape),                      # W3  [128, 128]  bf16 (padded cols)
                full_spec(b3.shape),                      # b3  [1, 128]    f32  (padded cols)
            ],
            out_specs=pl.BlockSpec((tb, OUT_PAD), lambda i: (i, 0)),
        ),
        compiler_params=pltpu.CompilerParams(
            dimension_semantics=("parallel",),
        ),
        cost_estimate=pl.CostEstimate(
            flops=flops, transcendentals=0, bytes_accessed=bytes_accessed),
    )(xb, w1, b1, w2, b2, w3, b3)

    # Drop batch padding and the lane padding on the output.
    return out[:B, :SEQ_LEN]


def init_params(key):
    """Deterministic f32 parameters, PyTorch nn.Linear-style init, [D_in, D_out]."""
    ks = jax.random.split(key, 6)

    def linear(kw, kb, d_in, d_out):
        bound = 1.0 / jnp.sqrt(jnp.float32(d_in))
        w = jax.random.uniform(kw, (d_in, d_out), jnp.float32, -bound, bound)
        b = jax.random.uniform(kb, (1, d_out), jnp.float32, -bound, bound)
        return w, b

    w1, b1 = linear(ks[0], ks[1], G_INPUT_DIM, H1)
    w2, b2 = linear(ks[2], ks[3], H1, H2)
    w3, b3 = linear(ks[4], ks[5], H2, SEQ_LEN)
    return (w1, b1, w2, b2, w3, b3)


def prepare_params(params):
    """One-time setup: keep K=64, zero-pad N_out 32->128, cast weights bf16."""
    w1, b1, w2, b2, w3, b3 = params
    w3p = jnp.zeros((H2, OUT_PAD), jnp.float32).at[:, :SEQ_LEN].set(w3)
    b3p = jnp.zeros((1, OUT_PAD), jnp.float32).at[:, :SEQ_LEN].set(b3)
    return (w1.astype(jnp.bfloat16), b1,
            w2.astype(jnp.bfloat16), b2,
            w3p.astype(jnp.bfloat16), b3p)


def reference_forward_mirror(x, prep_params):
    """Pure-JAX reference mirroring the kernel's bf16-operand / f32-acc math."""
    w1, b1, w2, b2, w3, b3 = prep_params
    xb = x.astype(jnp.bfloat16)
    h1 = jnp.maximum(jnp.dot(xb, w1, preferred_element_type=jnp.float32) + b1, 0.0)
    h2 = jnp.maximum(jnp.dot(h1.astype(jnp.bfloat16), w2,
                             preferred_element_type=jnp.float32) + b2, 0.0)
    out = jnp.dot(h2.astype(jnp.bfloat16), w3,
                  preferred_element_type=jnp.float32) + b3
    return out[:, :SEQ_LEN]


def reference_forward_f32(x, params):
    """Full-precision reference of the original PyTorch module (eval mode)."""
    w1, b1, w2, b2, w3, b3 = params
    h1 = jnp.maximum(x @ w1 + b1, 0.0)
    h2 = jnp.maximum(h1 @ w2 + b2, 0.0)
    return h2 @ w3 + b3


if __name__ == "__main__":
    key = jax.random.PRNGKey(0)
    k_p, k_x1, k_x2 = jax.random.split(key, 3)

    params = init_params(k_p)
    prep = prepare_params(params)

    # --- small batch: single block (tb == 8) ---
    x_small = jax.random.normal(k_x1, (8, G_INPUT_DIM), jnp.float32)
    out_small = jax.block_until_ready(wgenerator_forward(x_small, prep))
    assert out_small.shape == (8, SEQ_LEN)
    ref_small = reference_forward_mirror(x_small, prep)
    assert jnp.allclose(out_small, ref_small, atol=1e-3, rtol=1e-3)
    # bf16 weights/activations stay close to the original f32 module semantics
    ref_small_f32 = reference_forward_f32(x_small, params)
    assert jnp.allclose(out_small, ref_small_f32, atol=5e-2, rtol=5e-2)

    # --- ragged larger batch: exercises row padding + 2 even "parallel" steps ---
    x_big = jax.random.normal(k_x2, (300, G_INPUT_DIM), jnp.float32)
    out_big = jax.block_until_ready(wgenerator_forward(x_big, prep))
    assert out_big.shape == (300, SEQ_LEN)
    ref_big = reference_forward_mirror(x_big, prep)
    assert jnp.allclose(out_big, ref_big, atol=1e-3, rtol=1e-3)

    # TODO(synk): Dropout implemented as identity (eval-mode); training-mode
    # stochastic dropout would use pltpu.prng_seed + pltpu.prng_random_bits.
    print("KERNEL_OK")
</pallas_src>

<mosaic_0001>
module attributes {stable_mosaic.version = 11 : i64} {
  func.func @wgen_kernel(%arg0: i32, %arg1: memref<8x64xbf16, #tpu.memory_space<vmem>>, %arg2: memref<64x256xbf16, #tpu.memory_space<vmem>>, %arg3: memref<1x256xf32, #tpu.memory_space<vmem>>, %arg4: memref<256x128xbf16, #tpu.memory_space<vmem>>, %arg5: memref<1x128xf32, #tpu.memory_space<vmem>>, %arg6: memref<128x128xbf16, #tpu.memory_space<vmem>>, %arg7: memref<1x128xf32, #tpu.memory_space<vmem>>, %arg8: memref<8x128xf32, #tpu.memory_space<vmem>>) attributes {dimension_semantics = [#tpu.dimension_semantics<parallel>], iteration_bounds = array<i64: 1>, scalar_prefetch = 0 : i64, scratch_operands = 0 : i64, tpu.core_type = #tpu.core_type<tc>, window_params = [{transform_indices = @transform_0, window_bounds = array<i64: 8, 64>}, {pipeline_mode = #tpu.pipeline_mode<synchronous>, transform_indices = @transform_1, window_bounds = array<i64: 64, 256>}, {pipeline_mode = #tpu.pipeline_mode<synchronous>, transform_indices = @transform_2, window_bounds = array<i64: 1, 256>}, {pipeline_mode = #tpu.pipeline_mode<synchronous>, transform_indices = @transform_3, window_bounds = array<i64: 256, 128>}, {pipeline_mode = #tpu.pipeline_mode<synchronous>, transform_indices = @transform_4, window_bounds = array<i64: 1, 128>}, {pipeline_mode = #tpu.pipeline_mode<synchronous>, transform_indices = @transform_5, window_bounds = array<i64: 128, 128>}, {pipeline_mode = #tpu.pipeline_mode<synchronous>, transform_indices = @transform_6, window_bounds = array<i64: 1, 128>}, {transform_indices = @transform_7, window_bounds = array<i64: 8, 128>}]} {
    %c0 = arith.constant 0 : index
    %c0_0 = arith.constant 0 : index
    %0 = vector.load %arg1[%c0, %c0_0] : memref<8x64xbf16, #tpu.memory_space<vmem>>, vector<8x64xbf16>
    %c0_1 = arith.constant 0 : index
    %c0_2 = arith.constant 0 : index
    %1 = vector.load %arg2[%c0_1, %c0_2] : memref<64x256xbf16, #tpu.memory_space<vmem>>, vector<64x256xbf16>
    %cst = arith.constant dense<0.000000e+00> : vector<8x256xf32>
    %2 = tpu.matmul %0, %1, %cst {dimension_numbers = #tpu.dot_dimension_numbers<[1], [0], [0], [1], [0, 0, 1, 1], [], []>} : vector<8x64xbf16>, vector<64x256xbf16>, vector<8x256xf32> -> vector<8x256xf32>
    %c0_3 = arith.constant 0 : index
    %c0_4 = arith.constant 0 : index
    %3 = vector.load %arg3[%c0_3, %c0_4] : memref<1x256xf32, #tpu.memory_space<vmem>>, vector<1x256xf32>
    %4 = vector.broadcast %3 : vector<1x256xf32> to vector<8x256xf32>
    %5 = arith.addf %2, %4 : vector<8x256xf32>
    %cst_5 = arith.constant 0.000000e+00 : f32
    %6 = vector.broadcast %cst_5 : f32 to vector<8x256xf32>
    %7 = arith.maximumf %5, %6 : vector<8x256xf32>
    %8 = arith.truncf %7 : vector<8x256xf32> to vector<8x256xbf16>
    %c0_6 = arith.constant 0 : index
    %c0_7 = arith.constant 0 : index
    %9 = vector.load %arg4[%c0_6, %c0_7] : memref<256x128xbf16, #tpu.memory_space<vmem>>, vector<256x128xbf16>
    %cst_8 = arith.constant dense<0.000000e+00> : vector<8x128xf32>
    %10 = tpu.matmul %8, %9, %cst_8 {dimension_numbers = #tpu.dot_dimension_numbers<[1], [0], [0], [1], [0, 0, 1, 1], [], []>} : vector<8x256xbf16>, vector<256x128xbf16>, vector<8x128xf32> -> vector<8x128xf32>
    %c0_9 = arith.constant 0 : index
    %c0_10 = arith.constant 0 : index
    %11 = vector.load %arg5[%c0_9, %c0_10] : memref<1x128xf32, #tpu.memory_space<vmem>>, vector<1x128xf32>
    %12 = vector.broadcast %11 : vector<1x128xf32> to vector<8x128xf32>
    %13 = arith.addf %10, %12 : vector<8x128xf32>
    %cst_11 = arith.constant 0.000000e+00 : f32
    %14 = vector.broadcast %cst_11 : f32 to vector<8x128xf32>
    %15 = arith.maximumf %13, %14 : vector<8x128xf32>
    %16 = arith.truncf %15 : vector<8x128xf32> to vector<8x128xbf16>
    %c0_12 = arith.constant 0 : index
    %c0_13 = arith.constant 0 : index
    %17 = vector.load %arg6[%c0_12, %c0_13] : memref<128x128xbf16, #tpu.memory_space<vmem>>, vector<128x128xbf16>
    %cst_14 = arith.constant dense<0.000000e+00> : vector<8x128xf32>
    %18 = tpu.matmul %16, %17, %cst_14 {dimension_numbers = #tpu.dot_dimension_numbers<[1], [0], [0], [1], [0, 0, 1, 1], [], []>} : vector<8x128xbf16>, vector<128x128xbf16>, vector<8x128xf32> -> vector<8x128xf32>
    %c0_15 = arith.constant 0 : index
    %c0_16 = arith.constant 0 : index
    %19 = vector.load %arg7[%c0_15, %c0_16] : memref<1x128xf32, #tpu.memory_space<vmem>>, vector<1x128xf32>
    %20 = vector.broadcast %19 : vector<1x128xf32> to vector<8x128xf32>
    %21 = arith.addf %18, %20 : vector<8x128xf32>
    %c0_17 = arith.constant 0 : index
    %c0_18 = arith.constant 0 : index
    %22 = vector.load %arg8[%c0_17, %c0_18] : memref<8x128xf32, #tpu.memory_space<vmem>>, vector<8x128xf32>
    tpu.vector_store %arg8[%c0_17, %c0_18], %21 {strides = array<i32>} : memref<8x128xf32, #tpu.memory_space<vmem>>, vector<8x128xf32>,
    return
  }
  func.func @transform_0(%arg0: i32) -> (i32, i32) {
    %c0_i32 = arith.constant 0 : i32
    %c0_i32_0 = arith.constant 0 : i32
    return %arg0, %c0_i32 : i32, i32
  }
  func.func @transform_1(%arg0: i32) -> (i32, i32) {
    %c0_i32 = arith.constant 0 : i32
    %c0_i32_0 = arith.constant 0 : i32
    %c0_i32_1 = arith.constant 0 : i32
    return %c0_i32, %c0_i32_0 : i32, i32
  }
  func.func @transform_2(%arg0: i32) -> (i32, i32) {
    %c0_i32 = arith.constant 0 : i32
    %c0_i32_0 = arith.constant 0 : i32
    %c0_i32_1 = arith.constant 0 : i32
    return %c0_i32, %c0_i32_0 : i32, i32
  }
  func.func @transform_3(%arg0: i32) -> (i32, i32) {
    %c0_i32 = arith.constant 0 : i32
    %c0_i32_0 = arith.constant 0 : i32
    %c0_i32_1 = arith.constant 0 : i32
    return %c0_i32, %c0_i32_0 : i32, i32
  }
  func.func @transform_4(%arg0: i32) -> (i32, i32) {
    %c0_i32 = arith.constant 0 : i32
    %c0_i32_0 = arith.constant 0 : i32
    %c0_i32_1 = arith.constant 0 : i32
    return %c0_i32, %c0_i32_0 : i32, i32
  }
  func.func @transform_5(%arg0: i32) -> (i32, i32) {
    %c0_i32 = arith.constant 0 : i32
    %c0_i32_0 = arith.constant 0 : i32
    %c0_i32_1 = arith.constant 0 : i32
    return %c0_i32, %c0_i32_0 : i32, i32
  }
  func.func @transform_6(%arg0: i32) -> (i32, i32) {
    %c0_i32 = arith.constant 0 : i32
    %c0_i32_0 = arith.constant 0 : i32
    %c0_i32_1 = arith.constant 0 : i32
    return %c0_i32, %c0_i32_0 : i32, i32
  }
  func.func @transform_7(%arg0: i32) -> (i32, i32) {
    %c0_i32 = arith.constant 0 : i32
    %c0_i32_0 = arith.constant 0 : i32
    return %arg0, %c0_i32 : i32, i32
  }
}

</mosaic_0001>

<llo_original>
// kernel: tpu_custom_call.1
$region0: #{tpu_custom_call.1}
  #allocation0 [shape = 'u32[]', space=smem, size = 0x4, offset = 0x4, fixed_abs, tag = 'smem constant byte address 0x4 - core index']
  #allocation1 [shape = 'u32[144,128]{1,0:T(1,128)}', space=vmem, size = 0x12000, scoped, tag = 'internal scratch']
  %s0 = inlined_call_operand.hbm [shape: bf16[8,64], index: 0, kind: input, shape index: {}]
  %s1 = inlined_call_operand.hbm [shape: bf16[64,256], index: 1, kind: input, shape index: {}]
  %s2 = inlined_call_operand.vmem [shape: f32[1,256], index: 2, kind: input, shape index: {}]
  %s3 = inlined_call_operand.hbm [shape: bf16[256,128], index: 3, kind: input, shape index: {}]
  %s4 = inlined_call_operand.vmem [shape: f32[1,128], index: 4, kind: input, shape index: {}]
  %s5 = inlined_call_operand.hbm [shape: bf16[128,128], index: 5, kind: input, shape index: {}]
  %s6 = inlined_call_operand.vmem [shape: f32[1,128], index: 6, kind: input, shape index: {}]
  %s7 = inlined_call_operand.hbm [shape: f32[8,128], index: 7, kind: output, shape index: {}]
  %s8 = sld [smem:[#allocation0]]
  $region54: #{tpu_custom_call.1} parent=0
    _
  %s10 = ssub.s32 1, %s8
  %s11 = scalar_select 0, %s10, %s8
  $region1: #{tpu_custom_call.1} parent=0
    #allocation2 [shape = 'u8[2048]{0}', space=vmem, size = 0x800, scoped, tag = 'input window, operand 0, single buffered']
    #allocation3 [shape = 's32[1]{0}', space=sflag, size = 0x4, scoped, tag = 'scoped memory for tpu_custom_call.1']
    #allocation4 [shape = 's32[1]{0}', space=sflag, size = 0x4, scoped, tag = 'scoped memory for tpu_custom_call.1']
    #allocation5 [shape = 'u8[32768]{0}', space=vmem, size = 0x8000, scoped, tag = 'input window, operand 1, single buffered']
    #allocation6 [shape = 's32[1]{0}', space=sflag, size = 0x4, scoped, tag = 'scoped memory for tpu_custom_call.1']
    #allocation7 [shape = 'u8[65536]{0}', space=vmem, size = 0x10000, scoped, tag = 'input window, operand 3, single buffered']
    #allocation8 [shape = 'u8[32768]{0}', space=vmem, size = 0x8000, scoped, tag = 'input window, operand 5, single buffered']
    #allocation9 [shape = 's32[1]{0}', space=sflag, size = 0x4, scoped, tag = 'scoped memory for tpu_custom_call.1']
    #allocation10 [shape = 'u8[4096]{0}', space=vmem, size = 0x1000, scoped, tag = 'output window, operand 0, single buffered']
    %12 = vsyncpa [#allocation3], 0
    %13 = vsyncpa [#allocation6], 0
    %14 = vsyncpa [#allocation9], 0
    %15 = vsyncpa [#allocation4], 0
    // Predicated region
    $region2: #{tpu_custom_call.1} parent=1 // pred_check
      _
    $region3: #{tpu_custom_call.1} parent=1 // pred_check_branch
      %17 = sbr.rel (0) target = $region5
    $region4: #{tpu_custom_call.1} parent=1 // pred_region
      %s19 = ssub.s32 64, 64
      %20 = vsyncadd [#allocation3], %s19
      %s22 = sshll.u32 [#allocation2], 4
      %s23 = int_to_ptr.vmem [resolvable:$true] %s22
      %25 = dma.hbm_to_vmem [thread:$0]  %s0, 64, %s23, [#allocation3]
    $region5: #{tpu_custom_call.1} parent=1 // pred_fallthru
      _
    // Predicated region
    $region6: #{tpu_custom_call.1} parent=1 // pred_check
      _
    $region7: #{tpu_custom_call.1} parent=1 // pred_check_branch
      %27 = sbr.rel (0) target = $region9
    $region8: #{tpu_custom_call.1} parent=1 // pred_region
      %s29 = ssub.s32 1024, 1024
      %30 = vsyncadd [#allocation6], %s29
      %s31 = sshll.u32 [#allocation5], 4
      %s32 = int_to_ptr.vmem [resolvable:$true] %s31
      %37 = dma.hbm_to_vmem [thread:$0]  %s1, 1024, %s32, [#allocation6], 128, 128, 8
    $region9: #{tpu_custom_call.1} parent=1 // pred_fallthru
      _
    // Predicated region
    $region10: #{tpu_custom_call.1} parent=1 // pred_check
      _
    $region11: #{tpu_custom_call.1} parent=1 // pred_check_branch
      %39 = sbr.rel (0) target = $region13
    $region12: #{tpu_custom_call.1} parent=1 // pred_region
      _
    $region13: #{tpu_custom_call.1} parent=1 // pred_fallthru
      _
    // Predicated region
    $region14: #{tpu_custom_call.1} parent=1 // pred_check
      _
    $region15: #{tpu_custom_call.1} parent=1 // pred_check_branch
      %41 = sbr.rel (0) target = $region17
    $region16: #{tpu_custom_call.1} parent=1 // pred_region
      %s43 = ssub.s32 2048, 2048
      %44 = vsyncadd [#allocation6], %s43
      %s45 = sshll.u32 [#allocation7], 4
      %s46 = int_to_ptr.vmem [resolvable:$true] %s45
      %51 = dma.hbm_to_vmem [thread:$0]  %s3, 2048, %s46, [#allocation6], 64, 64, 4
    $region17: #{tpu_custom_call.1} parent=1 // pred_fallthru
      _
    // Predicated region
    $region18: #{tpu_custom_call.1} parent=1 // pred_check
      _
    $region19: #{tpu_custom_call.1} parent=1 // pred_check_branch
      %53 = sbr.rel (0) target = $region21
    $region20: #{tpu_custom_call.1} parent=1 // pred_region
      _
    $region21: #{tpu_custom_call.1} parent=1 // pred_fallthru
      _
    // Predicated region
    $region22: #{tpu_custom_call.1} parent=1 // pred_check
      _
    $region23: #{tpu_custom_call.1} parent=1 // pred_check_branch
      %55 = sbr.rel (0) target = $region25
    $region24: #{tpu_custom_call.1} parent=1 // pred_region
      %s57 = ssub.s32 1024, 1024
      %58 = vsyncadd [#allocation9], %s57
      %s59 = sshll.u32 [#allocation8], 4
      %s60 = int_to_ptr.vmem [resolvable:$true] %s59
      %65 = dma.hbm_to_vmem [thread:$0]  %s5, 1024, %s60, [#allocation9], 64, 64, 4
    $region25: #{tpu_custom_call.1} parent=1 // pred_fallthru
      _
    // Predicated region
    $region26: #{tpu_custom_call.1} parent=1 // pred_check
      _
    $region27: #{tpu_custom_call.1} parent=1 // pred_check_branch
      %67 = sbr.rel (0) target = $region29
    $region28: #{tpu_custom_call.1} parent=1 // pred_region
      _
    $region29: #{tpu_custom_call.1} parent=1 // pred_fallthru
      _
    // Predicated region
    $region30: #{tpu_custom_call.1} parent=1 // pred_check
      _
    $region31: #{tpu_custom_call.1} parent=1 // pred_check_branch
      %69 = sbr.rel (0) target = $region33
    $region32: #{tpu_custom_call.1} parent=1 // pred_region
      %70 = dma.done [#allocation3], 64
    $region33: #{tpu_custom_call.1} parent=1 // pred_fallthru
      _
    // Predicated region
    $region34: #{tpu_custom_call.1} parent=1 // pred_check
      _
    $region35: #{tpu_custom_call.1} parent=1 // pred_check_branch
      %72 = sbr.rel (0) target = $region37
    $region36: #{tpu_custom_call.1} parent=1 // pred_region
      %73 = dma.done [#allocation6], 1024
    $region37: #{tpu_custom_call.1} parent=1 // pred_fallthru
      _
    // Predicated region
    $region38: #{tpu_custom_call.1} parent=1 // pred_check
      _
    $region39: #{tpu_custom_call.1} parent=1 // pred_check_branch
      %75 = sbr.rel (0) target = $region41
    $region40: #{tpu_custom_call.1} parent=1 // pred_region
      %76 = dma.done [#allocation6], 2048
    $region41: #{tpu_custom_call.1} parent=1 // pred_fallthru
      _
    // Predicated region
    $region42: #{tpu_custom_call.1} parent=1 // pred_check
      _
    $region43: #{tpu_custom_call.1} parent=1 // pred_check_branch
      %78 = sbr.rel (0) target = $region45
    $region44: #{tpu_custom_call.1} parent=1 // pred_region
      %79 = dma.done [#allocation9], 1024
    $region45: #{tpu_custom_call.1} parent=1 // pred_fallthru
      _
    %v81 = vld [vmem:[#allocation2] sm:$0xf]
    %v82 = vld [vmem:[#allocation5] sm:$0xff]
    %v83 = vld [vmem:[#allocation5 + $0x8] sm:$0xff]
    %v84 = vld [vmem:[#allocation5 + $0x10] sm:$0xff]
    %v85 = vld [vmem:[#allocation5 + $0x18] sm:$0xff]
    %v86 = vld [vmem:[#allocation5 + $0x20] sm:$0xff]
    %v87 = vld [vmem:[#allocation5 + $0x28] sm:$0xff]
    %v88 = vld [vmem:[#allocation5 + $0x30] sm:$0xff]
    %v89 = vld [vmem:[#allocation5 + $0x38] sm:$0xff]
    %v90 = vld [vmem:[%s2] sm:$0x3]
    %v92 = vlaneseq
    %v93 = vshrl.u32 %v92, 7
    %v94 = vsub.s32 0, %v93
    %v95 = vrot.slane %v90, %v94
    %v96 = vlaneseq
    %v97 = vshrl.u32 %v96, 7
    %v98 = vsub.s32 1, %v97
    %v99 = vrot.slane %v90, %v98
    %v110 = vunpack.c.l.b16 %v82
    %v111 = vunpack.c.h.b16 %v82
    %v112 = vunpack.c.l.b16 %v83
    %v113 = vunpack.c.h.b16 %v83
    %v114 = vunpack.c.l.b16 %v84
    %v115 = vunpack.c.h.b16 %v84
    %v116 = vunpack.c.l.b16 %v85
    %v117 = vunpack.c.h.b16 %v85
    %v118 = vunpack.c.l.b16 %v86
    %v119 = vunpack.c.h.b16 %v86
    %v120 = vunpack.c.l.b16 %v87
    %v121 = vunpack.c.h.b16 %v87
    %v122 = vunpack.c.l.b16 %v88
    %v123 = vunpack.c.h.b16 %v88
    %v124 = vunpack.c.l.b16 %v89
    %v125 = vunpack.c.h.b16 %v89
    %v126 = vpack.c.b16 %v112, %v110
    %v127 = vpack.c.b16 %v113, %v111
    %v128 = vpack.c.b16 %v116, %v114
    %v129 = vpack.c.b16 %v117, %v115
    %v130 = vpack.c.b16 %v120, %v118
    %v131 = vpack.c.b16 %v121, %v119
    %v132 = vpack.c.b16 %v124, %v122
    %v133 = vpack.c.b16 %v125, %v123
    %vm142 = vcmask 523264
    %v144 = vsel %vm142, %v81, 0
    %146 = vmatprep.subr.bf16.mxu0 0
    %147 = vmatpush1.bf16.msra.mxu0 0
    %148 = vmatprep.subr.bf16.mxu0 0
    %149 = vmatpush1.bf16.msra.mxu0 0
    %150 = vmatprep.subr.bf16.mxu0 0
    %151 = vmatpush1.bf16.msra.mxu0 0
    %152 = vmatprep.subr.bf16.mxu0 0
    %153 = vmatpush1.bf16.msra.mxu0 0
    %154 = vmatprep.subr.bf16.mxu0 %v133
    %155 = vmatpush1.bf16.msra.mxu0 %v132
    %156 = vmatprep.subr.bf16.mxu0 %v131
    %157 = vmatpush1.bf16.msra.mxu0 %v130
    %158 = vmatprep.subr.bf16.mxu0 %v129
    %159 = vmatpush1.bf16.msra.mxu0 %v128
    %160 = vmatprep.subr.bf16.mxu0 %v127
    %161 = vmatpush1.bf16.msra.mxu0 %v126
    %162 = vmatprep.subr.bf16.mxu0 0
    %163 = vmatpush2.bf16.msra.mxu0 0
    %164 = vmatprep.subr.bf16.mxu0 0
    %165 = vmatpush2.bf16.msra.mxu0 0
    %166 = vmatprep.subr.bf16.mxu0 0
    %167 = vmatpush2.bf16.msra.mxu0 0
    %168 = vmatprep.subr.bf16.mxu0 0
    %169 = vmatpush2.bf16.msra.mxu0 0
    %170 = vmatprep.subr.bf16.mxu0 0
    %171 = vmatpush2.bf16.msra.mxu0 0
    %172 = vmatprep.subr.bf16.mxu0 0
    %173 = vmatpush2.bf16.msra.mxu0 0
    %174 = vmatprep.subr.bf16.mxu0 0
    %175 = vmatpush2.bf16.msra.mxu0 0
    %176 = vmatprep.subr.bf16.mxu0 0
    %177 = vmatpush2.bf16.msra.mxu0 0
    %178 = vmatprep.mubr.bf16.mxu0 0
    %179 = vmatmul.mubr.bf16.gmra.mxu0 %v144
    %v180 = vpop.f32.mrf.mxu0
    %v181 = vadd.f32 %v95, %v180
    %v182 = vpop.f32.mrf.mxu0
    %v183 = vadd.f32 %v99, %v182
    %v184 = vpop.f32.mrf.mxu0
    %v185 = vpop.f32.mrf.mxu0
    %186 = vdwg.mxu0
    %v187 = vmax.f32 %v181, 0.0
    %v188 = vmax.f32 %v183, 0.0
    %v189 = vpack.c.bf16 %v187, %v187
    %v190 = vpack.c.bf16 %v188, %v188
    %v191 = vld [vmem:[#allocation7] sm:$0xf]
    %v192 = vld [vmem:[#allocation7 + $0x4] sm:$0xf]
    %v193 = vld [vmem:[#allocation7 + $0x8] sm:$0xf]
    %v194 = vld [vmem:[#allocation7 + $0xc] sm:$0xf]
    %v195 = vld [vmem:[#allocation7 + $0x10] sm:$0xf]
    %v196 = vld [vmem:[#allocation7 + $0x14] sm:$0xf]
    %v197 = vld [vmem:[#allocation7 + $0x18] sm:$0xf]
    %v198 = vld [vmem:[#allocation7 + $0x1c] sm:$0xf]
    %v199 = vld [vmem:[#allocation7 + $0x20] sm:$0xf]
    %v200 = vld [vmem:[#allocation7 + $0x24] sm:$0xf]
    %v201 = vld [vmem:[#allocation7 + $0x28] sm:$0xf]
    %v202 = vld [vmem:[#allocation7 + $0x2c] sm:$0xf]
    %v203 = vld [vmem:[#allocation7 + $0x30] sm:$0xf]
    %v204 = vld [vmem:[#allocation7 + $0x34] sm:$0xf]
    %v205 = vld [vmem:[#allocation7 + $0x38] sm:$0xf]
    %v206 = vld [vmem:[#allocation7 + $0x3c] sm:$0xf]
    %v207 = vld [vmem:[#allocation7 + $0x40] sm:$0xf]
    %v208 = vld [vmem:[#allocation7 + $0x44] sm:$0xf]
    %v209 = vld [vmem:[#allocation7 + $0x48] sm:$0xf]
    %v210 = vld [vmem:[#allocation7 + $0x4c] sm:$0xf]
    %v211 = vld [vmem:[#allocation7 + $0x50] sm:$0xf]
    %v212 = vld [vmem:[#allocation7 + $0x54] sm:$0xf]
    %v213 = vld [vmem:[#allocation7 + $0x58] sm:$0xf]
    %v214 = vld [vmem:[#allocation7 + $0x5c] sm:$0xf]
    %v215 = vld [vmem:[#allocation7 + $0x60] sm:$0xf]
    %v216 = vld [vmem:[#allocation7 + $0x64] sm:$0xf]
    %v217 = vld [vmem:[#allocation7 + $0x68] sm:$0xf]
    %v218 = vld [vmem:[#allocation7 + $0x6c] sm:$0xf]
    %v219 = vld [vmem:[#allocation7 + $0x70] sm:$0xf]
    %v220 = vld [vmem:[#allocation7 + $0x74] sm:$0xf]
    %v221 = vld [vmem:[#allocation7 + $0x78] sm:$0xf]
    %v222 = vld [vmem:[#allocation7 + $0x7c] sm:$0xf]
    %v223 = vld [vmem:[%s4] sm:$0x1]
    %v225 = vlaneseq
    %v226 = vshrl.u32 %v225, 7
    %v227 = vsub.s32 0, %v226
    %v228 = vrot.slane %v223, %v227
    %v262 = vunpack.c.l.b16 %v191
    %v263 = vunpack.c.l.b16 %v192
    %v264 = vunpack.c.l.b16 %v193
    %v265 = vunpack.c.l.b16 %v194
    %v266 = vunpack.c.l.b16 %v195
    %v267 = vunpack.c.l.b16 %v196
    %v268 = vunpack.c.l.b16 %v197
    %v269 = vunpack.c.l.b16 %v198
    %v270 = vunpack.c.l.b16 %v199
    %v271 = vunpack.c.l.b16 %v200
    %v272 = vunpack.c.l.b16 %v201
    %v273 = vunpack.c.l.b16 %v202
    %v274 = vunpack.c.l.b16 %v203
    %v275 = vunpack.c.l.b16 %v204
    %v276 = vunpack.c.l.b16 %v205
    %v277 = vunpack.c.l.b16 %v206
    %v278 = vunpack.c.l.b16 %v207
    %v279 = vunpack.c.l.b16 %v208
    %v280 = vunpack.c.l.b16 %v209
    %v281 = vunpack.c.l.b16 %v210
    %v282 = vunpack.c.l.b16 %v211
    %v283 = vunpack.c.l.b16 %v212
    %v284 = vunpack.c.l.b16 %v213
    %v285 = vunpack.c.l.b16 %v214
    %v286 = vunpack.c.l.b16 %v215
    %v287 = vunpack.c.l.b16 %v216
    %v288 = vunpack.c.l.b16 %v217
    %v289 = vunpack.c.l.b16 %v218
    %v290 = vunpack.c.l.b16 %v219
    %v291 = vunpack.c.l.b16 %v220
    %v292 = vunpack.c.l.b16 %v221
    %v293 = vunpack.c.l.b16 %v222
    %v294 = vpack.c.b16 %v263, %v262
    %v295 = vpack.c.b16 %v265, %v264
    %v296 = vpack.c.b16 %v267, %v266
    %v297 = vpack.c.b16 %v269, %v268
    %v298 = vpack.c.b16 %v271, %v270
    %v299 = vpack.c.b16 %v273, %v272
    %v300 = vpack.c.b16 %v275, %v274
    %v301 = vpack.c.b16 %v277, %v276
    %v302 = vpack.c.b16 %v279, %v278
    %v303 = vpack.c.b16 %v281, %v280
    %v304 = vpack.c.b16 %v283, %v282
    %v305 = vpack.c.b16 %v285, %v284
    %v306 = vpack.c.b16 %v287, %v286
    %v307 = vpack.c.b16 %v289, %v288
    %v308 = vpack.c.b16 %v291, %v290
    %v309 = vpack.c.b16 %v293, %v292
    %326 = vmatprep.subr.bf16.mxu0 0
    %327 = vmatpush1.bf16.msra.mxu0 %v301
    %328 = vmatprep.subr.bf16.mxu0 0
    %329 = vmatpush1.bf16.msra.mxu0 %v300
    %330 = vmatprep.subr.bf16.mxu0 0
    %331 = vmatpush1.bf16.msra.mxu0 %v299
    %332 = vmatprep.subr.bf16.mxu0 0
    %333 = vmatpush1.bf16.msra.mxu0 %v298
    %334 = vmatprep.subr.bf16.mxu0 0
    %335 = vmatpush1.bf16.msra.mxu0 %v297
    %336 = vmatprep.subr.bf16.mxu0 0
    %337 = vmatpush1.bf16.msra.mxu0 %v296
    %338 = vmatprep.subr.bf16.mxu0 0
    %339 = vmatpush1.bf16.msra.mxu0 %v295
    %340 = vmatprep.subr.bf16.mxu0 0
    %341 = vmatpush1.bf16.msra.mxu0 %v294
    %342 = vmatprep.subr.bf16.mxu0 0
    %343 = vmatpush2.bf16.msra.mxu0 %v309
    %344 = vmatprep.subr.bf16.mxu0 0
    %345 = vmatpush2.bf16.msra.mxu0 %v308
    %346 = vmatprep.subr.bf16.mxu0 0
    %347 = vmatpush2.bf16.msra.mxu0 %v307
    %348 = vmatprep.subr.bf16.mxu0 0
    %349 = vmatpush2.bf16.msra.mxu0 %v306
    %350 = vmatprep.subr.bf16.mxu0 0
    %351 = vmatpush2.bf16.msra.mxu0 %v305
    %352 = vmatprep.subr.bf16.mxu0 0
    %353 = vmatpush2.bf16.msra.mxu0 %v304
    %354 = vmatprep.subr.bf16.mxu0 0
    %355 = vmatpush2.bf16.msra.mxu0 %v303
    %356 = vmatprep.subr.bf16.mxu0 0
    %357 = vmatpush2.bf16.msra.mxu0 %v302
    %358 = vmatprep.mubr.bf16.mxu0 %v190
    %359 = vmatmul.mubr.bf16.gmra.mxu0 %v189
    %v360 = vpop.f32.mrf.mxu0
    %v361 = vadd.f32 %v228, %v360
    %v362 = vpop.f32.mrf.mxu0
    %v363 = vpop.f32.mrf.mxu0
    %v364 = vpop.f32.mrf.mxu0
    %365 = vdwg.mxu0
    %v366 = vmax.f32 %v361, 0.0
    %v367 = vpack.c.bf16 %v366, %v366
    %v368 = vld [vmem:[#allocation8] sm:$0xf]
    %v369 = vld [vmem:[#allocation8 + $0x4] sm:$0xf]
    %v370 = vld [vmem:[#allocation8 + $0x8] sm:$0xf]
    %v371 = vld [vmem:[#allocation8 + $0xc] sm:$0xf]
    %v372 = vld [vmem:[#allocation8 + $0x10] sm:$0xf]
    %v373 = vld [vmem:[#allocation8 + $0x14] sm:$0xf]
    %v374 = vld [vmem:[#allocation8 + $0x18] sm:$0xf]
    %v375 = vld [vmem:[#allocation8 + $0x1c] sm:$0xf]
    %v376 = vld [vmem:[#allocation8 + $0x20] sm:$0xf]
    %v377 = vld [vmem:[#allocation8 + $0x24] sm:$0xf]
    %v378 = vld [vmem:[#allocation8 + $0x28] sm:$0xf]
    %v379 = vld [vmem:[#allocation8 + $0x2c] sm:$0xf]
    %v380 = vld [vmem:[#allocation8 + $0x30] sm:$0xf]
    %v381 = vld [vmem:[#allocation8 + $0x34] sm:$0xf]
    %v382 = vld [vmem:[#allocation8 + $0x38] sm:$0xf]
    %v383 = vld [vmem:[#allocation8 + $0x3c] sm:$0xf]
    %v384 = vld [vmem:[%s6] sm:$0x1]
    %v386 = vlaneseq
    %v387 = vshrl.u32 %v386, 7
    %v388 = vsub.s32 0, %v387
    %v389 = vrot.slane %v384, %v388
    %v407 = vunpack.c.l.b16 %v368
    %v408 = vunpack.c.l.b16 %v369
    %v409 = vunpack.c.l.b16 %v370
    %v410 = vunpack.c.l.b16 %v371
    %v411 = vunpack.c.l.b16 %v372
    %v412 = vunpack.c.l.b16 %v373
    %v413 = vunpack.c.l.b16 %v374
    %v414 = vunpack.c.l.b16 %v375
    %v415 = vunpack.c.l.b16 %v376
    %v416 = vunpack.c.l.b16 %v377
    %v417 = vunpack.c.l.b16 %v378
    %v418 = vunpack.c.l.b16 %v379
    %v419 = vunpack.c.l.b16 %v380
    %v420 = vunpack.c.l.b16 %v381
    %v421 = vunpack.c.l.b16 %v382
    %v422 = vunpack.c.l.b16 %v383
    %v423 = vpack.c.b16 %v408, %v407
    %v424 = vpack.c.b16 %v410, %v409
    %v425 = vpack.c.b16 %v412, %v411
    %v426 = vpack.c.b16 %v414, %v413
    %v427 = vpack.c.b16 %v416, %v415
    %v428 = vpack.c.b16 %v418, %v417
    %v429 = vpack.c.b16 %v420, %v419
    %v430 = vpack.c.b16 %v422, %v421
    %439 = vmatprep.subr.bf16.mxu0 0
    %440 = vmatpush1.bf16.msra.mxu0 %v430
    %441 = vmatprep.subr.bf16.mxu0 0
    %442 = vmatpush1.bf16.msra.mxu0 %v429
    %443 = vmatprep.subr.bf16.mxu0 0
    %444 = vmatpush1.bf16.msra.mxu0 %v428
    %445 = vmatprep.subr.bf16.mxu0 0
    %446 = vmatpush1.bf16.msra.mxu0 %v427
    %447 = vmatprep.subr.bf16.mxu0 0
    %448 = vmatpush1.bf16.msra.mxu0 %v426
    %449 = vmatprep.subr.bf16.mxu0 0
    %450 = vmatpush1.bf16.msra.mxu0 %v425
    %451 = vmatprep.subr.bf16.mxu0 0
    %452 = vmatpush1.bf16.msra.mxu0 %v424
    %453 = vmatprep.subr.bf16.mxu0 0
    %454 = vmatpush1.bf16.msra.mxu0 %v423
    %455 = vmatprep.subr.bf16.mxu0 0
    %456 = vmatpush2.bf16.msra.mxu0 0
    %457 = vmatprep.subr.bf16.mxu0 0
    %458 = vmatpush2.bf16.msra.mxu0 0
    %459 = vmatprep.subr.bf16.mxu0 0
    %460 = vmatpush2.bf16.msra.mxu0 0
    %461 = vmatprep.subr.bf16.mxu0 0
    %462 = vmatpush2.bf16.msra.mxu0 0
    %463 = vmatprep.subr.bf16.mxu0 0
    %464 = vmatpush2.bf16.msra.mxu0 0
    %465 = vmatprep.subr.bf16.mxu0 0
    %466 = vmatpush2.bf16.msra.mxu0 0
    %467 = vmatprep.subr.bf16.mxu0 0
    %468 = vmatpush2.bf16.msra.mxu0 0
    %469 = vmatprep.subr.bf16.mxu0 0
    %470 = vmatpush2.bf16.msra.mxu0 0
    %471 = vmatprep.mubr.bf16.mxu0 0
    %472 = vmatmul.mubr.bf16.gmra.mxu0 %v367
    %v473 = vpop.f32.mrf.mxu0
    %v474 = vadd.f32 %v389, %v473
    %v475 = vpop.f32.mrf.mxu0
    %v476 = vpop.f32.mrf.mxu0
    %v477 = vpop.f32.mrf.mxu0
    %478 = vdwg.mxu0
    %479 = vst [vmem:[#allocation10] sm:$0xff] %v474
    // Predicated region
    $region46: #{tpu_custom_call.1} parent=1 // pred_check
      _
    $region47: #{tpu_custom_call.1} parent=1 // pred_check_branch
      %481 = sbr.rel (0) target = $region49
    $region48: #{tpu_custom_call.1} parent=1 // pred_region
      %s483 = ssub.s32 128, 128
      %484 = vsyncadd [#allocation4], %s483
      %s486 = sshll.u32 [#allocation10], 4
      %s487 = int_to_ptr.vmem [resolvable:$true] %s486
      %489 = dma.vmem_to_hbm [thread:$0]  %s487, 128, %s7, [#allocation4]
    $region49: #{tpu_custom_call.1} parent=1 // pred_fallthru
      _
    // Predicated region
    $region50: #{tpu_custom_call.1} parent=1 // pred_check
      _
    $region51: #{tpu_custom_call.1} parent=1 // pred_check_branch
      %491 = sbr.rel (0) target = $region53
    $region52: #{tpu_custom_call.1} parent=1 // pred_region
      %492 = dma.done [#allocation4], 128
    $region53: #{tpu_custom_call.1} parent=1 // pred_fallthru
      _
    %493 = vsyncpa [#allocation3], 1
    %494 = vsyncpa [#allocation6], 1
    %495 = vsyncpa [#allocation9], 1
    %496 = vsyncpa [#allocation4], 1

</llo_original>
